<compile_context>
chip_gen: v6e
topology: v6e:2x2x1
jax: 0.10.0
libtpu: 0.0.40
codegen_flags: <defaults>
</compile_context>

<pallas_src>
import functools
import math

import jax
import jax.numpy as jnp
from jax.experimental import pallas as pl
from jax.experimental.pallas import tpu as pltpu


def _round_up(x, m):
    return (x + m - 1) // m * m


# ----------------------------------------------------------------------------
# Fused (im2col-matmul + BN bias + LeakyReLU [+ residual]) Pallas kernels
# ----------------------------------------------------------------------------
def _fused_matmul_kernel(a_ref, b_ref, bias_ref, o_ref, acc_ref, *, neg_slope):
    k = pl.program_id(2)

    @pl.when(k == 0)
    def _():
        acc_ref[...] = jnp.zeros_like(acc_ref)

    acc_ref[...] += jnp.dot(a_ref[...], b_ref[...],
                            preferred_element_type=jnp.float32)

    @pl.when(k == pl.num_programs(2) - 1)
    def _():
        y = acc_ref[...] + bias_ref[...]              # BN (scale folded into B)
        y = jnp.where(y >= 0, y, neg_slope * y)       # LeakyReLU(0.1)
        o_ref[...] = y.astype(o_ref.dtype)


def _fused_matmul_res_kernel(a_ref, b_ref, bias_ref, res_ref, o_ref, acc_ref,
                             *, neg_slope):
    k = pl.program_id(2)

    @pl.when(k == 0)
    def _():
        acc_ref[...] = jnp.zeros_like(acc_ref)

    acc_ref[...] += jnp.dot(a_ref[...], b_ref[...],
                            preferred_element_type=jnp.float32)

    @pl.when(k == pl.num_programs(2) - 1)
    def _():
        y = acc_ref[...] + bias_ref[...]              # BN (scale folded into B)
        y = jnp.where(y >= 0, y, neg_slope * y)       # LeakyReLU(0.1)
        y = y + res_ref[...].astype(jnp.float32)      # CBR: out += residual
        o_ref[...] = y.astype(o_ref.dtype)


def _pick_tiles(M, K, N):
    """Adaptive tile sizes: single M-block for tiny (deep) layers, 512-row
    tiles for large-M layers; bk/bn divide the padded K/N; bn <= 256."""
    if M <= 512:
        bm = _round_up(M, 16)          # one M block, no 128-row padding waste
    else:
        bm = 512
    Mp = _round_up(M, bm)

    Kp = _round_up(K, 128)
    if Kp <= 1024:
        bk = Kp                         # single K step: no grid-loop overhead
    else:
        bk = 128
        for cand in (512, 384, 256):
            if Kp % cand == 0:
                bk = cand
                break

    Np = _round_up(N, 128)
    bn = 256 if Np % 256 == 0 else 128
    return bm, bk, bn, Mp, Kp, Np


def fused_matmul_bn_lrelu(a, b, bias, residual=None, *, neg_slope=0.1,
                          out_dtype=jnp.bfloat16):
    """out = leaky_relu(a @ b + bias) [+ residual], bf16 operands on the MXU,
    f32 accumulation."""
    M, K = a.shape
    _, N = b.shape
    bm, bk, bn, Mp, Kp, Np = _pick_tiles(M, K, N)

    a_p = jnp.pad(a.astype(jnp.bfloat16), ((0, Mp - M), (0, Kp - K)))
    b_p = jnp.pad(b.astype(jnp.bfloat16), ((0, Kp - K), (0, Np - N)))
    bias_p = jnp.pad(bias.astype(jnp.float32).reshape(1, N),
                     ((0, 0), (0, Np - N)))

    in_specs = [
        pl.BlockSpec((bm, bk), lambda i, j, k: (i, k)),   # A (patches)
        pl.BlockSpec((bk, bn), lambda i, j, k: (k, j)),   # B (scaled weights)
        pl.BlockSpec((1, bn), lambda i, j, k: (0, j)),    # BN bias
    ]
    inputs = [a_p, b_p, bias_p]
    res_bytes = 0
    if residual is None:
        kernel = functools.partial(_fused_matmul_kernel, neg_slope=neg_slope)
    else:
        r_p = jnp.pad(residual.astype(jnp.bfloat16), ((0, Mp - M), (0, Np - N)))
        in_specs.append(pl.BlockSpec((bm, bn), lambda i, j, k: (i, j)))
        inputs.append(r_p)
        kernel = functools.partial(_fused_matmul_res_kernel, neg_slope=neg_slope)
        res_bytes = M * N * 2

    cost = pl.CostEstimate(
        flops=2 * M * N * K,
        transcendentals=0,
        bytes_accessed=M * K * 2 + K * N * 2 + M * N * 2 + res_bytes,
    )

    grid = (Mp // bm, Np // bn, Kp // bk)
    out = pl.pallas_call(
        kernel,
        out_shape=jax.ShapeDtypeStruct((Mp, Np), out_dtype),
        grid_spec=pltpu.PrefetchScalarGridSpec(
            num_scalar_prefetch=0,
            grid=grid,
            in_specs=in_specs,
            out_specs=pl.BlockSpec((bm, bn), lambda i, j, k: (i, j)),
            scratch_shapes=[pltpu.VMEM((bm, bn), jnp.float32)],
        ),
        compiler_params=pltpu.CompilerParams(
            dimension_semantics=("parallel", "parallel", "arbitrary"),
            vmem_limit_bytes=48 * 1024 * 1024),
        cost_estimate=cost,
    )(*inputs)
    return out[:M, :N]


# ----------------------------------------------------------------------------
# Conv glue: im2col patch extraction (pure layout work, stays in bf16)
# ----------------------------------------------------------------------------
def _im2col(x, kh, kw, stride, pad):
    N, H, W, C = x.shape
    xp = jnp.pad(x, ((0, 0), (pad, pad), (pad, pad), (0, 0)))
    Ho = (H + 2 * pad - kh) // stride + 1
    Wo = (W + 2 * pad - kw) // stride + 1
    cols = []
    for i in range(kh):
        for j in range(kw):
            cols.append(xp[:, i:i + stride * Ho:stride,
                           j:j + stride * Wo:stride, :])
    patches = jnp.concatenate(cols, axis=-1)            # (N, Ho, Wo, kh*kw*C)
    return patches.reshape(N * Ho * Wo, kh * kw * C), (N, Ho, Wo)


def bn_fold(gamma, beta, mean, var, eps=1e-5):
    """BatchNorm (inference) -> per-channel affine (scale, bias)."""
    scale = gamma / jnp.sqrt(var + eps)
    bias = beta - mean * scale
    return scale, bias


def conv_bn_lrelu(x_nhwc, w_oihw, bn_scale, bn_bias, stride, pad,
                  residual=None):
    """Conv2d(bias=False) + BatchNorm2d + LeakyReLU(0.1) [+ residual add]."""
    cout, cin, kh, kw = w_oihw.shape
    a, (n, ho, wo) = _im2col(x_nhwc, kh, kw, stride, pad)
    # PyTorch weight (Cout, Cin, kh, kw) -> (kh*kw*Cin, Cout) matching patch
    # order, with the BN scale folded into the output-channel columns.
    b = jnp.transpose(w_oihw, (2, 3, 1, 0)).reshape(kh * kw * cin, cout)
    b = b * bn_scale[None, :].astype(b.dtype)
    res = None if residual is None else residual.reshape(n * ho * wo, cout)
    out = fused_matmul_bn_lrelu(a, b, bn_bias, res)
    return out.reshape(n, ho, wo, cout)


# ----------------------------------------------------------------------------
# RAB parameter construction (deterministic, mirrors the PyTorch __init__)
# ----------------------------------------------------------------------------
def init_rab_params(key, layers):
    planes = [3, 32, 64, 128, 256, 512, 1024, 1024]

    def conv_w(k, cout, cin, ksize):
        n = ksize * ksize * cout
        std = math.sqrt(2.0 / n)
        return jax.random.normal(k, (cout, cin, ksize, ksize), jnp.float32) * std

    keys = iter(jax.random.split(key, 1 + sum(1 + 2 * b for b in layers)))
    params = {"conv1": conv_w(next(keys), planes[1], planes[0], 3), "stages": []}
    for s in range(5):
        p_in, p_out = planes[s + 1], planes[s + 2]
        stage = {"ds_w": conv_w(next(keys), p_out, p_in, 3), "blocks": []}
        for _ in range(layers[s]):
            stage["blocks"].append({
                "w1": conv_w(next(keys), p_in, p_out, 1),   # 1x1: p_out -> p_in
                "w2": conv_w(next(keys), p_out, p_in, 3),   # 3x3: p_in -> p_out
            })
        params["stages"].append(stage)
    return params


def rab_forward(params, x_nchw, eps=1e-5):
    # Untrained BatchNorm2d in eval mode: gamma=1, beta=0, mean=0, var=1.
    def fresh_bn(c):
        return bn_fold(jnp.ones((c,), jnp.float32), jnp.zeros((c,), jnp.float32),
                       jnp.zeros((c,), jnp.float32), jnp.ones((c,), jnp.float32),
                       eps)

    # NCHW -> NHWC; activations travel in bf16 between fused conv kernels.
    x = jnp.transpose(x_nchw, (0, 2, 3, 1)).astype(jnp.bfloat16)

    w = params["conv1"]
    s, b = fresh_bn(w.shape[0])
    x = conv_bn_lrelu(x, w, s, b, stride=1, pad=1)

    for stage in params["stages"]:
        w = stage["ds_w"]
        s, b = fresh_bn(w.shape[0])
        x = conv_bn_lrelu(x, w, s, b, stride=2, pad=1)
        for blk in stage["blocks"]:
            res = x
            w1 = blk["w1"]
            s1, b1 = fresh_bn(w1.shape[0])
            h = conv_bn_lrelu(x, w1, s1, b1, stride=1, pad=0)
            w2 = blk["w2"]
            s2, b2 = fresh_bn(w2.shape[0])
            # CBR: residual is added AFTER the second LeakyReLU (out += residual).
            x = conv_bn_lrelu(h, w2, s2, b2, stride=1, pad=1, residual=res)

    # TODO(synk): DSAL_layer(kernel_size) is not defined in the provided source
    # (nets/RIE.py only shows CBR/RAB); passing the layer-5 features through
    # unchanged rather than inventing its semantics.
    return jnp.transpose(x, (0, 3, 1, 2)).astype(jnp.float32)   # back to NCHW


rab_forward_jit = jax.jit(rab_forward)


if __name__ == "__main__":
    key = jax.random.PRNGKey(0)
    pkey, xkey, k1, k2, k3 = jax.random.split(key, 5)

    # --- spot-check the fused kernel against an f32 reference -----------------
    a_t = jax.random.normal(k1, (37, 300), jnp.float32)
    b_t = jax.random.normal(k2, (300, 65), jnp.float32)
    bias_t = jax.random.normal(k3, (65,), jnp.float32) * 0.1
    got = fused_matmul_bn_lrelu(a_t, b_t, bias_t).astype(jnp.float32)
    ref = a_t @ b_t + bias_t
    ref = jnp.where(ref >= 0, ref, 0.1 * ref)
    rel_err = jnp.max(jnp.abs(got - ref)) / (jnp.max(jnp.abs(ref)) + 1e-6)
    assert float(rel_err) < 5e-2, float(rel_err)   # bf16-operand tolerance

    # --- full RAB forward ------------------------------------------------------
    layers = [1, 1, 1, 1, 1]                 # small, consistent with _make_layer
    params = init_rab_params(pkey, layers)

    # NCHW input, like the PyTorch module (3 input channels required; 32x32 so
    # the five stride-2 stages reach 1x1).
    x = jax.random.normal(xkey, (2, 3, 32, 32), jnp.float32)

    out = rab_forward_jit(params, x)
    out = jax.block_until_ready(out)

    assert out.shape == (2, 1024, 1, 1), out.shape
    assert bool(jnp.all(jnp.isfinite(out)))
    print("KERNEL_OK")
</pallas_src>

<mosaic_0001>
module attributes {stable_mosaic.version = 11 : i64} {
  func.func @_fused_matmul_kernel(%arg0: i32, %arg1: i32, %arg2: i32, %arg3: memref<48x384xbf16, #tpu.memory_space<vmem>>, %arg4: memref<384x128xbf16, #tpu.memory_space<vmem>>, %arg5: memref<1x128xf32, #tpu.memory_space<vmem>>, %arg6: memref<48x128xbf16, #tpu.memory_space<vmem>>, %arg7: memref<48x128xf32, #tpu.memory_space<vmem>>) attributes {dimension_semantics = [#tpu.dimension_semantics<parallel>, #tpu.dimension_semantics<parallel>, #tpu.dimension_semantics<arbitrary>], iteration_bounds = array<i64: 1, 1, 1>, scalar_prefetch = 0 : i64, scratch_operands = 1 : i64, tpu.core_type = #tpu.core_type<tc>, window_params = [{transform_indices = @transform_0, window_bounds = array<i64: 48, 384>}, {transform_indices = @transform_1, window_bounds = array<i64: 384, 128>}, {transform_indices = @transform_2, window_bounds = array<i64: 1, 128>}, {transform_indices = @transform_3, window_bounds = array<i64: 48, 128>}]} {
    %c0_i32 = arith.constant 0 : i32
    %0 = arith.cmpi eq, %arg2, %c0_i32 : i32
    %1 = arith.extui %0 : i1 to i32
    %c0_i32_0 = arith.constant 0 : i32
    %2 = arith.cmpi ne, %1, %c0_i32_0 : i32
    scf.if %2 {
      %cst_10 = arith.constant 0.000000e+00 : f32
      %12 = vector.broadcast %cst_10 : f32 to vector<48x128xf32>
      %c0_11 = arith.constant 0 : index
      %c0_12 = arith.constant 0 : index
      %13 = vector.load %arg7[%c0_11, %c0_12] : memref<48x128xf32, #tpu.memory_space<vmem>>, vector<48x128xf32>
      tpu.vector_store %arg7[%c0_11, %c0_12], %12 {strides = array<i32>} : memref<48x128xf32, #tpu.memory_space<vmem>>, vector<48x128xf32>,
    } else {
    }
    %c0 = arith.constant 0 : index
    %c0_1 = arith.constant 0 : index
    %3 = vector.load %arg7[%c0, %c0_1] : memref<48x128xf32, #tpu.memory_space<vmem>>, vector<48x128xf32>
    %c0_2 = arith.constant 0 : index
    %c0_3 = arith.constant 0 : index
    %4 = vector.load %arg3[%c0_2, %c0_3] : memref<48x384xbf16, #tpu.memory_space<vmem>>, vector<48x384xbf16>
    %c0_4 = arith.constant 0 : index
    %c0_5 = arith.constant 0 : index
    %5 = vector.load %arg4[%c0_4, %c0_5] : memref<384x128xbf16, #tpu.memory_space<vmem>>, vector<384x128xbf16>
    %cst = arith.constant dense<0.000000e+00> : vector<48x128xf32>
    %6 = tpu.matmul %4, %5, %cst {dimension_numbers = #tpu.dot_dimension_numbers<[1], [0], [0], [1], [0, 0, 1, 1], [], []>} : vector<48x384xbf16>, vector<384x128xbf16>, vector<48x128xf32> -> vector<48x128xf32>
    %7 = arith.addf %3, %6 : vector<48x128xf32>
    %c0_6 = arith.constant 0 : index
    %c0_7 = arith.constant 0 : index
    %8 = vector.load %arg7[%c0_6, %c0_7] : memref<48x128xf32, #tpu.memory_space<vmem>>, vector<48x128xf32>
    tpu.vector_store %arg7[%c0_6, %c0_7], %7 {strides = array<i32>} : memref<48x128xf32, #tpu.memory_space<vmem>>, vector<48x128xf32>,
    %c0_i32_8 = arith.constant 0 : i32
    %9 = arith.cmpi eq, %arg2, %c0_i32_8 : i32
    %10 = arith.extui %9 : i1 to i32
    %c0_i32_9 = arith.constant 0 : i32
    %11 = arith.cmpi ne, %10, %c0_i32_9 : i32
    scf.if %11 {
      %c0_10 = arith.constant 0 : index
      %c0_11 = arith.constant 0 : index
      %12 = vector.load %arg7[%c0_10, %c0_11] : memref<48x128xf32, #tpu.memory_space<vmem>>, vector<48x128xf32>
      %c0_12 = arith.constant 0 : index
      %c0_13 = arith.constant 0 : index
      %13 = vector.load %arg5[%c0_12, %c0_13] : memref<1x128xf32, #tpu.memory_space<vmem>>, vector<1x128xf32>
      %14 = vector.broadcast %13 : vector<1x128xf32> to vector<48x128xf32>
      %15 = arith.addf %12, %14 : vector<48x128xf32>
      %cst_14 = arith.constant 0.000000e+00 : f32
      %16 = vector.broadcast %cst_14 : f32 to vector<48x128xf32>
      %17 = arith.cmpf oge, %15, %16 : vector<48x128xf32>
      %cst_15 = arith.constant 1.000000e-01 : f32
      %18 = vector.broadcast %cst_15 : f32 to vector<48x128xf32>
      %19 = arith.mulf %18, %15 : vector<48x128xf32>
      %20 = arith.select %17, %15, %19 : vector<48x128xi1>, vector<48x128xf32>
      %21 = arith.truncf %20 : vector<48x128xf32> to vector<48x128xbf16>
      %c0_16 = arith.constant 0 : index
      %c0_17 = arith.constant 0 : index
      %22 = vector.load %arg6[%c0_16, %c0_17] : memref<48x128xbf16, #tpu.memory_space<vmem>>, vector<48x128xbf16>
      tpu.vector_store %arg6[%c0_16, %c0_17], %21 {strides = array<i32>} : memref<48x128xbf16, #tpu.memory_space<vmem>>, vector<48x128xbf16>,
    } else {
    }
    return
  }
  func.func @transform_0(%arg0: i32, %arg1: i32, %arg2: i32) -> (i32, i32) {
    %c0_i32 = arith.constant 0 : i32
    return %arg0, %arg2 : i32, i32
  }
  func.func @transform_1(%arg0: i32, %arg1: i32, %arg2: i32) -> (i32, i32) {
    %c0_i32 = arith.constant 0 : i32
    return %arg2, %arg1 : i32, i32
  }
  func.func @transform_2(%arg0: i32, %arg1: i32, %arg2: i32) -> (i32, i32) {
    %c0_i32 = arith.constant 0 : i32
    %c0_i32_0 = arith.constant 0 : i32
    return %c0_i32, %arg1 : i32, i32
  }
  func.func @transform_3(%arg0: i32, %arg1: i32, %arg2: i32) -> (i32, i32) {
    %c0_i32 = arith.constant 0 : i32
    return %arg0, %arg1 : i32, i32
  }
}

</mosaic_0001>

<llo_original>
// kernel: tpu_custom_call.1
$region0: #{tpu_custom_call.1}
  #allocation0 [shape = 'u32[]', space=smem, size = 0x4, offset = 0x4, fixed_abs, tag = 'smem constant byte address 0x4 - core index']
  #allocation1 [shape = 'u32[144,128]{1,0:T(1,128)}', space=vmem, size = 0x12000, scoped, tag = 'internal scratch']
  #allocation2 [shape = 'f32[48,128]{1,0:T(8,128)}', space=vmem, size = 0x6000, scoped, tag = 'scratch operand']
  %s0 = inlined_call_operand.hbm [shape: bf16[48,384], index: 0, kind: input, shape index: {}]
  %s1 = inlined_call_operand.hbm [shape: bf16[384,128], index: 1, kind: input, shape index: {}]
  %s2 = inlined_call_operand.vmem [shape: f32[1,128], index: 2, kind: input, shape index: {}]
  %s3 = inlined_call_operand.hbm [shape: bf16[48,128], index: 3, kind: output, shape index: {}]
  %s4 = sld [smem:[#allocation0]]
  $region38: #{tpu_custom_call.1} parent=0
    _
  %s6 = ssub.s32 1, %s4
  %s7 = scalar_select 0, %s6, %s4
  $region1: #{tpu_custom_call.1} parent=0
    #allocation3 [shape = 'u8[36864]{0}', space=vmem, size = 0x9000, scoped, tag = 'input window, operand 0, single buffered']
    #allocation4 [shape = 's32[1]{0}', space=sflag, size = 0x4, scoped, tag = 'scoped memory for tpu_custom_call.1']
    #allocation5 [shape = 's32[1]{0}', space=sflag, size = 0x4, scoped, tag = 'scoped memory for tpu_custom_call.1']
    #allocation6 [shape = 'u8[98304]{0}', space=vmem, size = 0x18000, scoped, tag = 'input window, operand 1, single buffered']
    #allocation7 [shape = 's32[1]{0}', space=sflag, size = 0x4, scoped, tag = 'scoped memory for tpu_custom_call.1']
    #allocation8 [shape = 'u8[12288]{0}', space=vmem, size = 0x3000, scoped, tag = 'output window, operand 0, single buffered']
    %8 = vsyncpa [#allocation4], 0
    %9 = vsyncpa [#allocation7], 0
    %10 = vsyncpa [#allocation5], 0
    // Predicated region
    $region2: #{tpu_custom_call.1} parent=1 // pred_check
      _
    $region3: #{tpu_custom_call.1} parent=1 // pred_check_branch
      %12 = sbr.rel (0) target = $region5
    $region4: #{tpu_custom_call.1} parent=1 // pred_region
      %s14 = ssub.s32 1152, 1152
      %15 = vsyncadd [#allocation4], %s14
      %s16 = sshll.u32 [#allocation3], 4
      %s17 = int_to_ptr.vmem [resolvable:$true] %s16
      %22 = dma.hbm_to_vmem [thread:$0]  %s0, 1152, %s17, [#allocation4], 192, 192, 12
    $region5: #{tpu_custom_call.1} parent=1 // pred_fallthru
      _
    // Predicated region
    $region6: #{tpu_custom_call.1} parent=1 // pred_check
      _
    $region7: #{tpu_custom_call.1} parent=1 // pred_check_branch
      %24 = sbr.rel (0) target = $region9
    $region8: #{tpu_custom_call.1} parent=1 // pred_region
      %s26 = ssub.s32 3072, 3072
      %27 = vsyncadd [#allocation7], %s26
      %s28 = sshll.u32 [#allocation6], 4
      %s29 = int_to_ptr.vmem [resolvable:$true] %s28
      %34 = dma.hbm_to_vmem [thread:$0]  %s1, 3072, %s29, [#allocation7], 64, 64, 4
    $region9: #{tpu_custom_call.1} parent=1 // pred_fallthru
      _
    // Predicated region
    $region10: #{tpu_custom_call.1} parent=1 // pred_check
      _
    $region11: #{tpu_custom_call.1} parent=1 // pred_check_branch
      %36 = sbr.rel (0) target = $region13
    $region12: #{tpu_custom_call.1} parent=1 // pred_region
      _
    $region13: #{tpu_custom_call.1} parent=1 // pred_fallthru
      _
    // Predicated region
    $region14: #{tpu_custom_call.1} parent=1 // pred_check
      _
    $region15: #{tpu_custom_call.1} parent=1 // pred_check_branch
      %38 = sbr.rel (0) target = $region17
    $region16: #{tpu_custom_call.1} parent=1 // pred_region
      %39 = dma.done [#allocation4], 1152
    $region17: #{tpu_custom_call.1} parent=1 // pred_fallthru
      _
    // Predicated region
    $region18: #{tpu_custom_call.1} parent=1 // pred_check
      _
    $region19: #{tpu_custom_call.1} parent=1 // pred_check_branch
      %41 = sbr.rel (0) target = $region21
    $region20: #{tpu_custom_call.1} parent=1 // pred_region
      %42 = dma.done [#allocation7], 3072
    $region21: #{tpu_custom_call.1} parent=1 // pred_fallthru
      _
    %p44 = scmp.eq.s32.totalorder 0, 0
    // Predicated region
    $region22: #{tpu_custom_call.1} parent=1 // pred_check
      %p45 = pneg %p44
    $region23: #{tpu_custom_call.1} parent=1 // pred_check_branch
      %47 = sbr.rel (%p45) target = $region25
    $region24: #{tpu_custom_call.1} parent=1 // pred_region
      %48 = vst [vmem:[#allocation2] sm:$0xff] 0.0
      %49 = vst [vmem:[#allocation2 + $0x8] sm:$0xff] 0.0
      %50 = vst [vmem:[#allocation2 + $0x10] sm:$0xff] 0.0
      %51 = vst [vmem:[#allocation2 + $0x18] sm:$0xff] 0.0
      %52 = vst [vmem:[#allocation2 + $0x20] sm:$0xff] 0.0
      %53 = vst [vmem:[#allocation2 + $0x28] sm:$0xff] 0.0
    $region25: #{tpu_custom_call.1} parent=1 // pred_fallthru
      _
    %v54 = vld [vmem:[#allocation2] sm:$0xff]
    %v55 = vld [vmem:[#allocation2 + $0x8] sm:$0xff]
    %v56 = vld [vmem:[#allocation2 + $0x10] sm:$0xff]
    %v57 = vld [vmem:[#allocation2 + $0x18] sm:$0xff]
    %v58 = vld [vmem:[#allocation2 + $0x20] sm:$0xff]
    %v59 = vld [vmem:[#allocation2 + $0x28] sm:$0xff]
    %v60 = vld [vmem:[#allocation3] sm:$0xff]
    %v61 = vld [vmem:[#allocation3 + $0x8] sm:$0xf]
    %v62 = vld [vmem:[#allocation3 + $0xc] sm:$0xff]
    %v63 = vld [vmem:[#allocation3 + $0x14] sm:$0xf]
    %v64 = vld [vmem:[#allocation3 + $0x18] sm:$0xff]
    %v65 = vld [vmem:[#allocation3 + $0x20] sm:$0xf]
    %v66 = vld [vmem:[#allocation3 + $0x24] sm:$0xff]
    %v67 = vld [vmem:[#allocation3 + $0x2c] sm:$0xf]
    %v68 = vld [vmem:[#allocation3 + $0x30] sm:$0xff]
    %v69 = vld [vmem:[#allocation3 + $0x38] sm:$0xf]
    %v70 = vld [vmem:[#allocation3 + $0x3c] sm:$0xff]
    %v71 = vld [vmem:[#allocation3 + $0x44] sm:$0xf]
    %v72 = vld [vmem:[#allocation6] sm:$0xf]
    %v73 = vld [vmem:[#allocation6 + $0x4] sm:$0xf]
    %v74 = vld [vmem:[#allocation6 + $0x8] sm:$0xf]
    %v75 = vld [vmem:[#allocation6 + $0xc] sm:$0xf]
    %v76 = vld [vmem:[#allocation6 + $0x10] sm:$0xf]
    %v77 = vld [vmem:[#allocation6 + $0x14] sm:$0xf]
    %v78 = vld [vmem:[#allocation6 + $0x18] sm:$0xf]
    %v79 = vld [vmem:[#allocation6 + $0x1c] sm:$0xf]
    %v80 = vld [vmem:[#allocation6 + $0x20] sm:$0xf]
    %v81 = vld [vmem:[#allocation6 + $0x24] sm:$0xf]
    %v82 = vld [vmem:[#allocation6 + $0x28] sm:$0xf]
    %v83 = vld [vmem:[#allocation6 + $0x2c] sm:$0xf]
    %v84 = vld [vmem:[#allocation6 + $0x30] sm:$0xf]
    %v85 = vld [vmem:[#allocation6 + $0x34] sm:$0xf]
    %v86 = vld [vmem:[#allocation6 + $0x38] sm:$0xf]
    %v87 = vld [vmem:[#allocation6 + $0x3c] sm:$0xf]
    %v88 = vld [vmem:[#allocation6 + $0x40] sm:$0xf]
    %v89 = vld [vmem:[#allocation6 + $0x44] sm:$0xf]
    %v90 = vld [vmem:[#allocation6 + $0x48] sm:$0xf]
    %v91 = vld [vmem:[#allocation6 + $0x4c] sm:$0xf]
    %v92 = vld [vmem:[#allocation6 + $0x50] sm:$0xf]
    %v93 = vld [vmem:[#allocation6 + $0x54] sm:$0xf]
    %v94 = vld [vmem:[#allocation6 + $0x58] sm:$0xf]
    %v95 = vld [vmem:[#allocation6 + $0x5c] sm:$0xf]
    %v96 = vld [vmem:[#allocation6 + $0x60] sm:$0xf]
    %v97 = vld [vmem:[#allocation6 + $0x64] sm:$0xf]
    %v98 = vld [vmem:[#allocation6 + $0x68] sm:$0xf]
    %v99 = vld [vmem:[#allocation6 + $0x6c] sm:$0xf]
    %v100 = vld [vmem:[#allocation6 + $0x70] sm:$0xf]
    %v101 = vld [vmem:[#allocation6 + $0x74] sm:$0xf]
    %v102 = vld [vmem:[#allocation6 + $0x78] sm:$0xf]
    %v103 = vld [vmem:[#allocation6 + $0x7c] sm:$0xf]
    %v104 = vld [vmem:[#allocation6 + $0x80] sm:$0xf]
    %v105 = vld [vmem:[#allocation6 + $0x84] sm:$0xf]
    %v106 = vld [vmem:[#allocation6 + $0x88] sm:$0xf]
    %v107 = vld [vmem:[#allocation6 + $0x8c] sm:$0xf]
    %v108 = vld [vmem:[#allocation6 + $0x90] sm:$0xf]
    %v109 = vld [vmem:[#allocation6 + $0x94] sm:$0xf]
    %v110 = vld [vmem:[#allocation6 + $0x98] sm:$0xf]
    %v111 = vld [vmem:[#allocation6 + $0x9c] sm:$0xf]
    %v112 = vld [vmem:[#allocation6 + $0xa0] sm:$0xf]
    %v113 = vld [vmem:[#allocation6 + $0xa4] sm:$0xf]
    %v114 = vld [vmem:[#allocation6 + $0xa8] sm:$0xf]
    %v115 = vld [vmem:[#allocation6 + $0xac] sm:$0xf]
    %v116 = vld [vmem:[#allocation6 + $0xb0] sm:$0xf]
    %v117 = vld [vmem:[#allocation6 + $0xb4] sm:$0xf]
    %v118 = vld [vmem:[#allocation6 + $0xb8] sm:$0xf]
    %v119 = vld [vmem:[#allocation6 + $0xbc] sm:$0xf]
    %v132 = vunpack.c.l.b16 %v60
    %v133 = vunpack.c.h.b16 %v60
    %v134 = vunpack.c.l.b16 %v61
    %v135 = vunpack.c.l.b16 %v62
    %v136 = vunpack.c.h.b16 %v62
    %v137 = vunpack.c.l.b16 %v63
    %v138 = vunpack.c.l.b16 %v64
    %v139 = vunpack.c.h.b16 %v64
    %v140 = vunpack.c.l.b16 %v65
    %v141 = vunpack.c.l.b16 %v66
    %v142 = vunpack.c.h.b16 %v66
    %v143 = vunpack.c.l.b16 %v67
    %v144 = vunpack.c.l.b16 %v68
    %v145 = vunpack.c.h.b16 %v68
    %v146 = vunpack.c.l.b16 %v69
    %v147 = vunpack.c.l.b16 %v70
    %v148 = vunpack.c.h.b16 %v70
    %v149 = vunpack.c.l.b16 %v71
    %v150 = vpack.c.b16 %v135, %v132
    %v151 = vpack.c.b16 %v136, %v133
    %v152 = vpack.c.b16 %v137, %v134
    %v153 = vpack.c.b16 %v141, %v138
    %v154 = vpack.c.b16 %v142, %v139
    %v155 = vpack.c.b16 %v143, %v140
    %v156 = vpack.c.b16 %v147, %v144
    %v157 = vpack.c.b16 %v148, %v145
    %v158 = vpack.c.b16 %v149, %v146
    %v216 = vunpack.c.l.b16 %v72
    %v217 = vunpack.c.l.b16 %v73
    %v218 = vunpack.c.l.b16 %v74
    %v219 = vunpack.c.l.b16 %v75
    %v220 = vunpack.c.l.b16 %v76
    %v221 = vunpack.c.l.b16 %v77
    %v222 = vunpack.c.l.b16 %v78
    %v223 = vunpack.c.l.b16 %v79
    %v224 = vunpack.c.l.b16 %v80
    %v225 = vunpack.c.l.b16 %v81
    %v226 = vunpack.c.l.b16 %v82
    %v227 = vunpack.c.l.b16 %v83
    %v228 = vunpack.c.l.b16 %v84
    %v229 = vunpack.c.l.b16 %v85
    %v230 = vunpack.c.l.b16 %v86
    %v231 = vunpack.c.l.b16 %v87
    %v232 = vunpack.c.l.b16 %v88
    %v233 = vunpack.c.l.b16 %v89
    %v234 = vunpack.c.l.b16 %v90
    %v235 = vunpack.c.l.b16 %v91
    %v236 = vunpack.c.l.b16 %v92
    %v237 = vunpack.c.l.b16 %v93
    %v238 = vunpack.c.l.b16 %v94
    %v239 = vunpack.c.l.b16 %v95
    %v240 = vunpack.c.l.b16 %v96
    %v241 = vunpack.c.l.b16 %v97
    %v242 = vunpack.c.l.b16 %v98
    %v243 = vunpack.c.l.b16 %v99
    %v244 = vunpack.c.l.b16 %v100
    %v245 = vunpack.c.l.b16 %v101
    %v246 = vunpack.c.l.b16 %v102
    %v247 = vunpack.c.l.b16 %v103
    %v248 = vunpack.c.l.b16 %v104
    %v249 = vunpack.c.l.b16 %v105
    %v250 = vunpack.c.l.b16 %v106
    %v251 = vunpack.c.l.b16 %v107
    %v252 = vunpack.c.l.b16 %v108
    %v253 = vunpack.c.l.b16 %v109
    %v254 = vunpack.c.l.b16 %v110
    %v255 = vunpack.c.l.b16 %v111
    %v256 = vunpack.c.l.b16 %v112
    %v257 = vunpack.c.l.b16 %v113
    %v258 = vunpack.c.l.b16 %v114
    %v259 = vunpack.c.l.b16 %v115
    %v260 = vunpack.c.l.b16 %v116
    %v261 = vunpack.c.l.b16 %v117
    %v262 = vunpack.c.l.b16 %v118
    %v263 = vunpack.c.l.b16 %v119
    %v264 = vpack.c.b16 %v217, %v216
    %v265 = vpack.c.b16 %v219, %v218
    %v266 = vpack.c.b16 %v221, %v220
    %v267 = vpack.c.b16 %v223, %v222
    %v268 = vpack.c.b16 %v225, %v224
    %v269 = vpack.c.b16 %v227, %v226
    %v270 = vpack.c.b16 %v229, %v228
    %v271 = vpack.c.b16 %v231, %v230
    %v272 = vpack.c.b16 %v233, %v232
    %v273 = vpack.c.b16 %v235, %v234
    %v274 = vpack.c.b16 %v237, %v236
    %v275 = vpack.c.b16 %v239, %v238
    %v276 = vpack.c.b16 %v241, %v240
    %v277 = vpack.c.b16 %v243, %v242
    %v278 = vpack.c.b16 %v245, %v244
    %v279 = vpack.c.b16 %v247, %v246
    %v280 = vpack.c.b16 %v249, %v248
    %v281 = vpack.c.b16 %v251, %v250
    %v282 = vpack.c.b16 %v253, %v252
    %v283 = vpack.c.b16 %v255, %v254
    %v284 = vpack.c.b16 %v257, %v256
    %v285 = vpack.c.b16 %v259, %v258
    %v286 = vpack.c.b16 %v261, %v260
    %v287 = vpack.c.b16 %v263, %v262
    %312 = vmatprep.subr.bf16.mxu0 0
    %313 = vmatpush1.bf16.msra.mxu0 %v271
    %314 = vmatprep.subr.bf16.mxu0 0
    %315 = vmatpush1.bf16.msra.mxu0 %v270
    %316 = vmatprep.subr.bf16.mxu0 0
    %317 = vmatpush1.bf16.msra.mxu0 %v269
    %318 = vmatprep.subr.bf16.mxu0 0
    %319 = vmatpush1.bf16.msra.mxu0 %v268
    %320 = vmatprep.subr.bf16.mxu0 0
    %321 = vmatpush1.bf16.msra.mxu0 %v267
    %322 = vmatprep.subr.bf16.mxu0 0
    %323 = vmatpush1.bf16.msra.mxu0 %v266
    %324 = vmatprep.subr.bf16.mxu0 0
    %325 = vmatpush1.bf16.msra.mxu0 %v265
    %326 = vmatprep.subr.bf16.mxu0 0
    %327 = vmatpush1.bf16.msra.mxu0 %v264
    %328 = vmatprep.subr.bf16.mxu0 0
    %329 = vmatpush2.bf16.msra.mxu0 %v279
    %330 = vmatprep.subr.bf16.mxu0 0
    %331 = vmatpush2.bf16.msra.mxu0 %v278
    %332 = vmatprep.subr.bf16.mxu0 0
    %333 = vmatpush2.bf16.msra.mxu0 %v277
    %334 = vmatprep.subr.bf16.mxu0 0
    %335 = vmatpush2.bf16.msra.mxu0 %v276
    %336 = vmatprep.subr.bf16.mxu0 0
    %337 = vmatpush2.bf16.msra.mxu0 %v275
    %338 = vmatprep.subr.bf16.mxu0 0
    %339 = vmatpush2.bf16.msra.mxu0 %v274
    %340 = vmatprep.subr.bf16.mxu0 0
    %341 = vmatpush2.bf16.msra.mxu0 %v273
    %342 = vmatprep.subr.bf16.mxu0 0
    %343 = vmatpush2.bf16.msra.mxu0 %v272
    %344 = vmatprep.mubr.bf16.mxu0 %v151
    %345 = vmatmul.mubr.bf16.gmra.mxu0 %v150
    %v346 = vpop.f32.mrf.mxu0
    %v347 = vadd.f32 0.0, %v346
    %v348 = vpop.f32.mrf.mxu0
    %v349 = vpop.f32.mrf.mxu0
    %v350 = vadd.f32 0.0, %v349
    %v351 = vpop.f32.mrf.mxu0
    %352 = vmatprep.mubr.bf16.mxu0 %v154
    %353 = vmatmul.mubr.bf16.gmra.mxu0 %v153
    %v354 = vpop.f32.mrf.mxu0
    %v355 = vadd.f32 0.0, %v354
    %v356 = vpop.f32.mrf.mxu0
    %v357 = vpop.f32.mrf.mxu0
    %v358 = vadd.f32 0.0, %v357
    %v359 = vpop.f32.mrf.mxu0
    %360 = vmatprep.mubr.bf16.mxu0 %v157
    %361 = vmatmul.mubr.bf16.gmra.mxu0 %v156
    %v362 = vpop.f32.mrf.mxu0
    %v363 = vadd.f32 0.0, %v362
    %v364 = vpop.f32.mrf.mxu0
    %v365 = vpop.f32.mrf.mxu0
    %v366 = vadd.f32 0.0, %v365
    %v367 = vpop.f32.mrf.mxu0
    %368 = vdwg.mxu0
    %369 = vmatprep.subr.bf16.mxu0 0
    %370 = vmatpush1.bf16.msra.mxu0 %v287
    %371 = vmatprep.subr.bf16.mxu0 0
    %372 = vmatpush1.bf16.msra.mxu0 %v286
    %373 = vmatprep.subr.bf16.mxu0 0
    %374 = vmatpush1.bf16.msra.mxu0 %v285
    %375 = vmatprep.subr.bf16.mxu0 0
    %376 = vmatpush1.bf16.msra.mxu0 %v284
    %377 = vmatprep.subr.bf16.mxu0 0
    %378 = vmatpush1.bf16.msra.mxu0 %v283
    %379 = vmatprep.subr.bf16.mxu0 0
    %380 = vmatpush1.bf16.msra.mxu0 %v282
    %381 = vmatprep.subr.bf16.mxu0 0
    %382 = vmatpush1.bf16.msra.mxu0 %v281
    %383 = vmatprep.subr.bf16.mxu0 0
    %384 = vmatpush1.bf16.msra.mxu0 %v280
    %385 = vmatprep.subr.bf16.mxu0 0
    %386 = vmatpush2.bf16.msra.mxu0 0
    %387 = vmatprep.subr.bf16.mxu0 0
    %388 = vmatpush2.bf16.msra.mxu0 0
    %389 = vmatprep.subr.bf16.mxu0 0
    %390 = vmatpush2.bf16.msra.mxu0 0
    %391 = vmatprep.subr.bf16.mxu0 0
    %392 = vmatpush2.bf16.msra.mxu0 0
    %393 = vmatprep.subr.bf16.mxu0 0
    %394 = vmatpush2.bf16.msra.mxu0 0
    %395 = vmatprep.subr.bf16.mxu0 0
    %396 = vmatpush2.bf16.msra.mxu0 0
    %397 = vmatprep.subr.bf16.mxu0 0
    %398 = vmatpush2.bf16.msra.mxu0 0
    %399 = vmatprep.subr.bf16.mxu0 0
    %400 = vmatpush2.bf16.msra.mxu0 0
    %401 = vmatprep.mubr.bf16.mxu0 0
    %402 = vmatmul.mubr.bf16.gmra.mxu0 %v152
    %v403 = vpop.f32.mrf.mxu0
    %v404 = vadd.f32 %v347, %v403
    %v405 = vpop.f32.mrf.mxu0
    %v406 = vpop.f32.mrf.mxu0
    %v407 = vadd.f32 %v350, %v406
    %v408 = vpop.f32.mrf.mxu0
    %409 = vmatprep.mubr.bf16.mxu0 0
    %410 = vmatmul.mubr.bf16.gmra.mxu0 %v155
    %v411 = vpop.f32.mrf.mxu0
    %v412 = vadd.f32 %v355, %v411
    %v413 = vpop.f32.mrf.mxu0
    %v414 = vpop.f32.mrf.mxu0
    %v415 = vadd.f32 %v358, %v414
    %v416 = vpop.f32.mrf.mxu0
    %417 = vmatprep.mubr.bf16.mxu0 0
    %418 = vmatmul.mubr.bf16.gmra.mxu0 %v158
    %v419 = vpop.f32.mrf.mxu0
    %v420 = vadd.f32 %v363, %v419
    %v421 = vpop.f32.mrf.mxu0
    %v422 = vpop.f32.mrf.mxu0
    %v423 = vadd.f32 %v366, %v422
    %v424 = vpop.f32.mrf.mxu0
    %425 = vdwg.mxu0
    %v426 = vadd.f32 %v54, %v404
    %v427 = vadd.f32 %v55, %v407
    %v428 = vadd.f32 %v56, %v412
    %v429 = vadd.f32 %v57, %v415
    %v430 = vadd.f32 %v58, %v420
    %v431 = vadd.f32 %v59, %v423
    %432 = vst [vmem:[#allocation2] sm:$0xff] %v426
    %433 = vst [vmem:[#allocation2 + $0x8] sm:$0xff] %v427
    %434 = vst [vmem:[#allocation2 + $0x10] sm:$0xff] %v428
    %435 = vst [vmem:[#allocation2 + $0x18] sm:$0xff] %v429
    %436 = vst [vmem:[#allocation2 + $0x20] sm:$0xff] %v430
    %437 = vst [vmem:[#allocation2 + $0x28] sm:$0xff] %v431
    // Predicated region
    $region26: #{tpu_custom_call.1} parent=1 // pred_check
      %p438 = pneg %p44
    $region27: #{tpu_custom_call.1} parent=1 // pred_check_branch
      %440 = sbr.rel (%p438) target = $region29
    $region28: #{tpu_custom_call.1} parent=1 // pred_region
      %v441 = vld [vmem:[#allocation2] sm:$0xff]
      %v442 = vld [vmem:[#allocation2 + $0x8] sm:$0xff]
      %v443 = vld [vmem:[#allocation2 + $0x10] sm:$0xff]
      %v444 = vld [vmem:[#allocation2 + $0x18] sm:$0xff]
      %v445 = vld [vmem:[#allocation2 + $0x20] sm:$0xff]
      %v446 = vld [vmem:[#allocation2 + $0x28] sm:$0xff]
      %v447 = vld [vmem:[%s2] sm:$0x1]
      %v449 = vlaneseq
      %v450 = vshrl.u32 %v449, 7
      %v451 = vsub.s32 0, %v450
      %v452 = vrot.slane %v447, %v451
      %v454 = vadd.f32 %v441, %v452
      %v455 = vadd.f32 %v442, %v452
      %v456 = vadd.f32 %v443, %v452
      %v457 = vadd.f32 %v444, %v452
      %v458 = vadd.f32 %v445, %v452
      %v459 = vadd.f32 %v446, %v452
      %vm460 = vcmp.ge.f32.partialorder %v454, 0.0
      %vm461 = vcmp.ge.f32.partialorder %v455, 0.0
      %vm462 = vcmp.ge.f32.partialorder %v456, 0.0
      %vm463 = vcmp.ge.f32.partialorder %v457, 0.0
      %vm464 = vcmp.ge.f32.partialorder %v458, 0.0
      %vm465 = vcmp.ge.f32.partialorder %v459, 0.0
      %v466 = vmul.f32 %v454, 0.1
      %v467 = vmul.f32 %v455, 0.1
      %v468 = vmul.f32 %v456, 0.1
      %v469 = vmul.f32 %v457, 0.1
      %v470 = vmul.f32 %v458, 0.1
      %v471 = vmul.f32 %v459, 0.1
      %v472 = vsel %vm460, %v454, %v466
      %v473 = vsel %vm461, %v455, %v467
      %v474 = vsel %vm462, %v456, %v468
      %v475 = vsel %vm463, %v457, %v469
      %v476 = vsel %vm464, %v458, %v470
      %v477 = vsel %vm465, %v459, %v471
      %v478 = vpack.c.bf16 %v473, %v472
      %v479 = vpack.c.bf16 %v475, %v474
      %v480 = vpack.c.bf16 %v477, %v476
      %v484 = vunpack.c.l.b16 %v478
      %v485 = vunpack.c.h.b16 %v478
      %v486 = vunpack.c.l.b16 %v479
      %v487 = vunpack.c.h.b16 %v479
      %v488 = vunpack.c.l.b16 %v480
      %v489 = vunpack.c.h.b16 %v480
      %v490 = vpack.c.b16 %v484, %v484
      %v491 = vpack.c.b16 %v485, %v485
      %v492 = vpack.c.b16 %v486, %v486
      %v493 = vpack.c.b16 %v487, %v487
      %v494 = vpack.c.b16 %v488, %v488
      %v495 = vpack.c.b16 %v489, %v489
      %502 = vst [vmem:[#allocation8] sm:$0xf] %v490
      %503 = vst [vmem:[#allocation8 + $0x4] sm:$0xf] %v491
      %504 = vst [vmem:[#allocation8 + $0x8] sm:$0xf] %v492
      %505 = vst [vmem:[#allocation8 + $0xc] sm:$0xf] %v493
      %506 = vst [vmem:[#allocation8 + $0x10] sm:$0xf] %v494
      %507 = vst [vmem:[#allocation8 + $0x14] sm:$0xf] %v495
    $region29: #{tpu_custom_call.1} parent=1 // pred_fallthru
      _
    // Predicated region
    $region30: #{tpu_custom_call.1} parent=1 // pred_check
      _
    $region31: #{tpu_custom_call.1} parent=1 // pred_check_branch
      %509 = sbr.rel (0) target = $region33
    $region32: #{tpu_custom_call.1} parent=1 // pred_region
      %s511 = ssub.s32 384, 384
      %512 = vsyncadd [#allocation5], %s511
      %s513 = sshll.u32 [#allocation8], 4
      %s514 = int_to_ptr.vmem [resolvable:$true] %s513
      %519 = dma.vmem_to_hbm [thread:$0]  %s514, 384, %s3, [#allocation5], 64, 64, 4
    $region33: #{tpu_custom_call.1} parent=1 // pred_fallthru
      _
    // Predicated region
    $region34: #{tpu_custom_call.1} parent=1 // pred_check
      _
    $region35: #{tpu_custom_call.1} parent=1 // pred_check_branch
      %521 = sbr.rel (0) target = $region37
    $region36: #{tpu_custom_call.1} parent=1 // pred_region
      %522 = dma.done [#allocation5], 384
    $region37: #{tpu_custom_call.1} parent=1 // pred_fallthru
      _
    %523 = vsyncpa [#allocation4], 1
    %524 = vsyncpa [#allocation7], 1
    %525 = vsyncpa [#allocation5], 1

</llo_original>
